<compile_context>
chip_gen: v6e
topology: v6e:2x2x1
jax: 0.10.0
libtpu: 0.0.40
codegen_flags: <defaults>
</compile_context>

<pallas_src>
import functools
import math

import jax
import jax.numpy as jnp
import numpy as np
from jax import lax
from jax.experimental import pallas as pl
from jax.experimental.pallas import tpu as pltpu

_SQRT2 = math.sqrt(2.0)
_VMEM_LIMIT = 48 * 1024 * 1024  # above v5e(16MiB)/v6e(32MiB) defaults, below v7x 64MiB


def _gelu_exact(x):
    # torch.nn.GELU() default == exact erf formulation.
    return 0.5 * x * (1.0 + lax.erf(x / _SQRT2))


# --------------------------------------------------------------------------- #
# Kernels
# --------------------------------------------------------------------------- #
def _mean_pool_classifier_kernel(hs_ref, w1_ref, b1_ref, w2_ref, b2_ref,
                                 logits_ref, acc_ref, *, inv_t):
    """Tiled mean-pool over time + Linear -> GELU -> (Dropout) -> Linear.

    grid = (B_tiles, T_tiles); acc_ref holds the running f32 time-sum per B tile.
    The classifier MLP (bf16 MXU matmuls, f32 accumulation) runs at the last
    T step only.
    """
    t_idx = pl.program_id(1)

    @pl.when(t_idx == 0)
    def _init():
        acc_ref[...] = jnp.zeros_like(acc_ref)

    # (b_tile, t_tile, H) bf16 -> accumulate the time-sum in f32.
    acc_ref[...] += jnp.sum(hs_ref[...].astype(jnp.float32), axis=1)

    @pl.when(t_idx == pl.num_programs(1) - 1)
    def _finalize():
        pooled = acc_ref[...] * inv_t                                  # (b_tile, H) f32
        h = jnp.dot(pooled.astype(jnp.bfloat16), w1_ref[...],
                    preferred_element_type=jnp.float32) + b1_ref[...]
        h = _gelu_exact(h)
        # TODO(synk): torch Dropout(p=0.1) is active in .train(); identity here (eval).
        logits_ref[...] = jnp.dot(h.astype(jnp.bfloat16), w2_ref[...],
                                  preferred_element_type=jnp.float32) + b2_ref[...]


def _classifier_ce_kernel(pooled_ref, w1_ref, b1_ref, w2_ref, b2_ref, labels_ref,
                          logits_ref, loss_ref):
    """Fused Linear -> GELU -> (Dropout) -> Linear + CrossEntropy (mean).

    Logits are lane-padded; padded bias columns are -1e9 so they vanish in
    the softmax.  Keeps logits in VMEM (no HBM round-trip before the loss).
    """
    h = jnp.dot(pooled_ref[...].astype(jnp.bfloat16), w1_ref[...],
                preferred_element_type=jnp.float32) + b1_ref[...]
    h = _gelu_exact(h)
    # TODO(synk): Dropout(0.1) treated as identity (eval semantics).
    logits = jnp.dot(h.astype(jnp.bfloat16), w2_ref[...],
                     preferred_element_type=jnp.float32) + b2_ref[...]
    logits_ref[...] = logits

    m = jnp.max(logits, axis=-1, keepdims=True)
    z = logits - m
    lse = jnp.log(jnp.sum(jnp.exp(z), axis=-1, keepdims=True))
    logp = z - lse
    cols = lax.broadcasted_iota(jnp.int32, logits.shape, 1)
    onehot = (cols == labels_ref[...]).astype(jnp.float32)
    nll = -jnp.sum(onehot * logp, axis=-1, keepdims=True)              # (B, 1)
    loss_ref[...] = jnp.mean(nll).reshape(1, 1)


def _cnn_feature_kernel(hs_ref, w1_ref, b1_ref, w2_ref, b2_ref, w3_ref, b3_ref,
                        out_ref):
    """Per-batch CNN head, channels-last (time=sublane, channels=lane):

       Conv1d(H,H,3,p=1)+ReLU -> MaxPool1d(2) -> Conv1d(H,2H,3,p=1)+ReLU ->
       MaxPool1d(2) -> Conv1d(2H,2H,3,p=1)+ReLU -> AdaptiveAvgPool1d(1) -> Flatten.

       Conv1d = 3 shifted (T,Cin)@(Cin,Cout) MXU matmuls (bf16 in, f32 acc);
       weights are stored (k, Cin, Cout).  MaxPool floors odd lengths like torch.
    """
    x = hs_ref[0]                                                      # (T, Cin) bf16

    def conv1d_relu(xb, w, b):                                         # w: (3,Cin,Cout)
        t, cin = xb.shape
        zero = jnp.zeros((1, cin), xb.dtype)
        # "same" zero padding along time (sublane axis).
        # TODO(synk): could use pltpu.roll + edge mask to avoid this small copy.
        xp = jnp.concatenate([zero, xb, zero], axis=0)                 # (T+2, Cin)
        y = (jnp.dot(xp[0:t], w[0], preferred_element_type=jnp.float32)
             + jnp.dot(xp[1:t + 1], w[1], preferred_element_type=jnp.float32)
             + jnp.dot(xp[2:t + 2], w[2], preferred_element_type=jnp.float32)
             + b)                                                      # (T, Cout) f32
        return jnp.maximum(y, 0.0)                                     # ReLU

    def maxpool2(y):                                                   # MaxPool1d(2)
        t, c = y.shape
        t2 = (t // 2) * 2                                              # torch floors odd T
        return jnp.max(y[:t2].reshape(t2 // 2, 2, c), axis=1)

    y = maxpool2(conv1d_relu(x, w1_ref[...], b1_ref[...])).astype(jnp.bfloat16)
    y = maxpool2(conv1d_relu(y, w2_ref[...], b2_ref[...])).astype(jnp.bfloat16)
    y = conv1d_relu(y, w3_ref[...], b3_ref[...])                       # (T//4, 2H) f32
    out_ref[...] = jnp.mean(y, axis=0, keepdims=True)                  # (1, 2H)
    # TODO(synk): for very long T, tile the time axis with a 1-row halo instead of
    #   holding the full (T, C) activation per batch element (v7x VMEM budget).


def _ce_loss_kernel(logits_ref, labels_ref, loss_ref):
    """torch.nn.CrossEntropyLoss (mean).  Padded logit columns are -1e9."""
    logits = logits_ref[...]                                           # (B, L_pad) f32
    labels = labels_ref[...]                                           # (B, 1) int32
    m = jnp.max(logits, axis=-1, keepdims=True)
    z = logits - m
    lse = jnp.log(jnp.sum(jnp.exp(z), axis=-1, keepdims=True))
    logp = z - lse
    cols = lax.broadcasted_iota(jnp.int32, logits.shape, 1)
    onehot = (cols == labels).astype(jnp.float32)
    nll = -jnp.sum(onehot * logp, axis=-1, keepdims=True)              # (B, 1)
    loss_ref[...] = jnp.mean(nll).reshape(1, 1)


# --------------------------------------------------------------------------- #
# Wrappers (glue)
# --------------------------------------------------------------------------- #
def _cnn_features(hs_bf16, p):
    B, T, H = hs_bf16.shape
    H2 = 2 * H
    return pl.pallas_call(
        _cnn_feature_kernel,
        out_shape=jax.ShapeDtypeStruct((B, H2), jnp.float32),
        grid=(B,),
        in_specs=[
            pl.BlockSpec((1, T, H), lambda b: (b, 0, 0)),
            pl.BlockSpec((3, H, H), lambda b: (0, 0, 0)),
            pl.BlockSpec((1, H), lambda b: (0, 0)),
            pl.BlockSpec((3, H, H2), lambda b: (0, 0, 0)),
            pl.BlockSpec((1, H2), lambda b: (0, 0)),
            pl.BlockSpec((3, H2, H2), lambda b: (0, 0, 0)),
            pl.BlockSpec((1, H2), lambda b: (0, 0)),
        ],
        out_specs=pl.BlockSpec((1, H2), lambda b: (b, 0)),
        compiler_params=pltpu.CompilerParams(
            dimension_semantics=("parallel",),
            vmem_limit_bytes=_VMEM_LIMIT),
        # TODO(synk): single-buffer the constant-index weight blocks
        #   (pipeline_mode=pl.Buffered(1)) once verified on this toolchain.
    )(hs_bf16,
      p["cw1"].astype(jnp.bfloat16), p["cb1"].astype(jnp.float32),
      p["cw2"].astype(jnp.bfloat16), p["cb2"].astype(jnp.float32),
      p["cw3"].astype(jnp.bfloat16), p["cb3"].astype(jnp.float32))


def wav2vec2_classifier_forward(hidden_states, params, labels=None, mean_pool=True):
    """Mirrors Wav2Vec2Classifier.forward downstream of the backbone.
    Returns (loss, logits); loss is None when labels is None."""
    B, T, H = hidden_states.shape
    num_labels = params["w2"].shape[1]
    L_pad = pl.cdiv(num_labels, 128) * 128                     # lane-dense logits
    Hc = params["w1"].shape[0]                                  # H or 2H

    hs_bf16 = hidden_states.astype(jnp.bfloat16)                # bf16 MXU inputs / HBM

    # Classifier weights: bf16 matmul inputs, f32 biases; w2/b2 lane-padded
    # (padded bias columns = -1e9 so softmax/CE ignore them).
    w1 = params["w1"].astype(jnp.bfloat16)
    b1 = params["b1"].astype(jnp.float32)
    w2 = (jnp.zeros((Hc, L_pad), jnp.float32)
          .at[:, :num_labels].set(params["w2"])).astype(jnp.bfloat16)
    b2 = jnp.full((1, L_pad), -1e9, jnp.float32).at[:, :num_labels].set(params["b2"])

    labels2d = None
    if labels is not None:
        labels2d = labels.reshape(-1, 1).astype(jnp.int32)

    if mean_pool:
        # --- tiled mean-pool + fused classifier ---
        b_tile = next(c for c in (8, 4, 2, 1) if B % c == 0)
        if T <= 512:
            t_tile, t_pad = T, T
        else:
            t_tile = 512
            t_pad = pl.cdiv(T, t_tile) * t_tile
            hs_bf16 = jnp.pad(hs_bf16, ((0, 0), (0, t_pad - T), (0, 0)))  # zeros: sum safe
        grid = (B // b_tile, t_pad // t_tile)

        kernel = functools.partial(_mean_pool_classifier_kernel, inv_t=1.0 / T)
        logits_pad = pl.pallas_call(
            kernel,
            out_shape=jax.ShapeDtypeStruct((B, L_pad), jnp.float32),
            grid=grid,
            in_specs=[
                pl.BlockSpec((b_tile, t_tile, H), lambda b, t: (b, t, 0)),
                pl.BlockSpec((Hc, Hc), lambda b, t: (0, 0)),
                pl.BlockSpec((1, Hc), lambda b, t: (0, 0)),
                pl.BlockSpec((Hc, L_pad), lambda b, t: (0, 0)),
                pl.BlockSpec((1, L_pad), lambda b, t: (0, 0)),
            ],
            out_specs=pl.BlockSpec((b_tile, L_pad), lambda b, t: (b, 0)),
            scratch_shapes=[pltpu.VMEM((b_tile, Hc), jnp.float32)],
            compiler_params=pltpu.CompilerParams(
                dimension_semantics=("parallel", "arbitrary"),
                vmem_limit_bytes=_VMEM_LIMIT),
        )(hs_bf16, w1, b1, w2, b2)

        logits = logits_pad[:, :num_labels]
        loss = None
        if labels2d is not None:
            loss = pl.pallas_call(
                _ce_loss_kernel,
                out_shape=jax.ShapeDtypeStruct((1, 1), jnp.float32),
            )(logits_pad, labels2d)[0, 0]
        return loss, logits

    # --- CNN head (channels-last, no HBM transpose) + fused classifier/CE ---
    pooled = _cnn_features(hs_bf16, params)                     # (B, 2H) f32
    lbl = labels2d if labels2d is not None else jnp.zeros((B, 1), jnp.int32)
    logits_pad, loss11 = pl.pallas_call(
        _classifier_ce_kernel,
        out_shape=(jax.ShapeDtypeStruct((B, L_pad), jnp.float32),
                   jax.ShapeDtypeStruct((1, 1), jnp.float32)),
    )(pooled, w1, b1, w2, b2, lbl)
    logits = logits_pad[:, :num_labels]
    loss = loss11[0, 0] if labels2d is not None else None
    return loss, logits


# --------------------------------------------------------------------------- #
# Deterministic parameter init (shapes per the module's __init__)
# --------------------------------------------------------------------------- #
def init_params(key, hidden_size, num_labels, mean_pool=True):
    ks = jax.random.split(key, 12)
    p = {}
    h = hidden_size
    if not mean_pool:
        h2 = 2 * hidden_size
        # Conv1d weights stored channels-last as (kernel=3, Cin, Cout);
        # torch stores (Cout, Cin, 3).
        p["cw1"] = 0.05 * jax.random.normal(ks[4], (3, h, h), jnp.float32)
        p["cb1"] = 0.01 * jax.random.normal(ks[5], (1, h), jnp.float32)
        p["cw2"] = 0.05 * jax.random.normal(ks[6], (3, h, h2), jnp.float32)
        p["cb2"] = 0.01 * jax.random.normal(ks[7], (1, h2), jnp.float32)
        p["cw3"] = 0.05 * jax.random.normal(ks[8], (3, h2, h2), jnp.float32)
        p["cb3"] = 0.01 * jax.random.normal(ks[9], (1, h2), jnp.float32)
        h = h2
    p["w1"] = 0.05 * jax.random.normal(ks[0], (h, h), jnp.float32)
    p["b1"] = 0.01 * jax.random.normal(ks[1], (1, h), jnp.float32)
    p["w2"] = 0.05 * jax.random.normal(ks[2], (h, num_labels), jnp.float32)
    p["b2"] = 0.01 * jax.random.normal(ks[3], (1, num_labels), jnp.float32)
    return p


# --------------------------------------------------------------------------- #
# Pure-JAX reference (correctness check only; f32 everywhere)
# --------------------------------------------------------------------------- #
def ref_forward(hidden_states, p, labels, mean_pool=True):
    if mean_pool:
        pooled = jnp.mean(hidden_states, axis=1)
    else:
        def conv_relu(x, w, b):                                 # x (B,T,C), w (3,Cin,Cout)
            t = x.shape[1]
            xp = jnp.pad(x, ((0, 0), (1, 1), (0, 0)))
            y = sum(jnp.einsum("btc,co->bto", xp[:, k:k + t], w[k]) for k in range(3))
            return jnp.maximum(y + b, 0.0)

        def mp2(x):
            b_, t, c = x.shape
            t2 = (t // 2) * 2
            return jnp.max(x[:, :t2].reshape(b_, t2 // 2, 2, c), axis=2)

        y = mp2(conv_relu(hidden_states, p["cw1"], p["cb1"]))
        y = mp2(conv_relu(y, p["cw2"], p["cb2"]))
        y = conv_relu(y, p["cw3"], p["cb3"])
        pooled = jnp.mean(y, axis=1)
    h = pooled @ p["w1"] + p["b1"]
    h = 0.5 * h * (1.0 + jax.scipy.special.erf(h / _SQRT2))
    logits = h @ p["w2"] + p["b2"]
    logp = jax.nn.log_softmax(logits, axis=-1)
    loss = -jnp.mean(logp[jnp.arange(logits.shape[0]), labels])
    return loss, logits


# --------------------------------------------------------------------------- #
if __name__ == "__main__":
    B, T, H, NUM_LABELS = 2, 8, 32, 4
    key = jax.random.PRNGKey(0)
    k_hs, k_p1, k_p2 = jax.random.split(key, 3)

    hidden_states = jax.random.normal(k_hs, (B, T, H), jnp.float32)
    labels = jnp.array([1, 3], dtype=jnp.int32)

    TOL = dict(rtol=3e-2, atol=3e-2)  # bf16 MXU inputs vs. pure-f32 reference

    # --- mean_pool=True path (module default) ---
    params_mp = init_params(k_p1, H, NUM_LABELS, mean_pool=True)
    loss_mp, logits_mp = wav2vec2_classifier_forward(
        hidden_states, params_mp, labels=labels, mean_pool=True)
    jax.block_until_ready((loss_mp, logits_mp))
    rloss, rlogits = ref_forward(hidden_states, params_mp, labels, mean_pool=True)
    np.testing.assert_allclose(np.asarray(logits_mp), np.asarray(rlogits), **TOL)
    np.testing.assert_allclose(float(loss_mp), float(rloss), **TOL)

    # --- mean_pool=False path (CNN classifier head) ---
    params_cnn = init_params(k_p2, H, NUM_LABELS, mean_pool=False)
    loss_cnn, logits_cnn = wav2vec2_classifier_forward(
        hidden_states, params_cnn, labels=labels, mean_pool=False)
    jax.block_until_ready((loss_cnn, logits_cnn))
    rloss_c, rlogits_c = ref_forward(hidden_states, params_cnn, labels, mean_pool=False)
    np.testing.assert_allclose(np.asarray(logits_cnn), np.asarray(rlogits_c), **TOL)
    np.testing.assert_allclose(float(loss_cnn), float(rloss_c), **TOL)

    # labels=None branch (loss must be None, logits unchanged path)
    loss_none, logits_none = wav2vec2_classifier_forward(
        hidden_states, params_mp, labels=None, mean_pool=True)
    jax.block_until_ready(logits_none)
    assert loss_none is None

    assert logits_mp.shape == (B, NUM_LABELS) and logits_cnn.shape == (B, NUM_LABELS)
    print("KERNEL_OK")
</pallas_src>

<mosaic_0001>
module attributes {stable_mosaic.version = 11 : i64} {
  func.func @_mean_pool_classifier_kernel(%arg0: i32, %arg1: i32, %arg2: memref<2x8x32xbf16, #tpu.memory_space<vmem>>, %arg3: memref<32x32xbf16, #tpu.memory_space<vmem>>, %arg4: memref<1x32xf32, #tpu.memory_space<vmem>>, %arg5: memref<32x128xbf16, #tpu.memory_space<vmem>>, %arg6: memref<1x128xf32, #tpu.memory_space<vmem>>, %arg7: memref<2x128xf32, #tpu.memory_space<vmem>>, %arg8: memref<2x32xf32, #tpu.memory_space<vmem>>) attributes {dimension_semantics = [#tpu.dimension_semantics<parallel>, #tpu.dimension_semantics<arbitrary>], iteration_bounds = array<i64: 1, 1>, scalar_prefetch = 0 : i64, scratch_operands = 1 : i64, tpu.core_type = #tpu.core_type<tc>, window_params = [{transform_indices = @transform_0, window_bounds = array<i64: 2, 8, 32>}, {pipeline_mode = #tpu.pipeline_mode<synchronous>, transform_indices = @transform_1, window_bounds = array<i64: 32, 32>}, {pipeline_mode = #tpu.pipeline_mode<synchronous>, transform_indices = @transform_2, window_bounds = array<i64: 1, 32>}, {pipeline_mode = #tpu.pipeline_mode<synchronous>, transform_indices = @transform_3, window_bounds = array<i64: 32, 128>}, {pipeline_mode = #tpu.pipeline_mode<synchronous>, transform_indices = @transform_4, window_bounds = array<i64: 1, 128>}, {transform_indices = @transform_5, window_bounds = array<i64: 2, 128>}]} {
    %c0_i32 = arith.constant 0 : i32
    %0 = arith.cmpi eq, %arg1, %c0_i32 : i32
    %1 = arith.extui %0 : i1 to i32
    %c0_i32_0 = arith.constant 0 : i32
    %2 = arith.cmpi ne, %1, %c0_i32_0 : i32
    scf.if %2 {
      %cst_9 = arith.constant 0.000000e+00 : f32
      %12 = vector.broadcast %cst_9 : f32 to vector<2x32xf32>
      %c0_10 = arith.constant 0 : index
      %c0_11 = arith.constant 0 : index
      %13 = vector.load %arg8[%c0_10, %c0_11] : memref<2x32xf32, #tpu.memory_space<vmem>>, vector<2x32xf32>
      tpu.vector_store %arg8[%c0_10, %c0_11], %12 {strides = array<i32>} : memref<2x32xf32, #tpu.memory_space<vmem>>, vector<2x32xf32>,
    } else {
    }
    %c0 = arith.constant 0 : index
    %c0_1 = arith.constant 0 : index
    %3 = vector.load %arg8[%c0, %c0_1] : memref<2x32xf32, #tpu.memory_space<vmem>>, vector<2x32xf32>
    %c0_2 = arith.constant 0 : index
    %c0_3 = arith.constant 0 : index
    %c0_4 = arith.constant 0 : index
    %4 = vector.load %arg2[%c0_2, %c0_3, %c0_4] : memref<2x8x32xbf16, #tpu.memory_space<vmem>>, vector<2x8x32xbf16>
    %5 = arith.extf %4 : vector<2x8x32xbf16> to vector<2x8x32xf32>
    %cst = arith.constant dense<0.000000e+00> : vector<2x32xf32>
    %6 = vector.multi_reduction <add>, %5, %cst [1] : vector<2x8x32xf32> to vector<2x32xf32>
    %7 = arith.addf %3, %6 : vector<2x32xf32>
    %c0_5 = arith.constant 0 : index
    %c0_6 = arith.constant 0 : index
    %8 = vector.load %arg8[%c0_5, %c0_6] : memref<2x32xf32, #tpu.memory_space<vmem>>, vector<2x32xf32>
    tpu.vector_store %arg8[%c0_5, %c0_6], %7 {strides = array<i32>} : memref<2x32xf32, #tpu.memory_space<vmem>>, vector<2x32xf32>,
    %c0_i32_7 = arith.constant 0 : i32
    %9 = arith.cmpi eq, %arg1, %c0_i32_7 : i32
    %10 = arith.extui %9 : i1 to i32
    %c0_i32_8 = arith.constant 0 : i32
    %11 = arith.cmpi ne, %10, %c0_i32_8 : i32
    scf.if %11 {
      %c0_9 = arith.constant 0 : index
      %c0_10 = arith.constant 0 : index
      %12 = vector.load %arg8[%c0_9, %c0_10] : memref<2x32xf32, #tpu.memory_space<vmem>>, vector<2x32xf32>
      %cst_11 = arith.constant 1.250000e-01 : f32
      %13 = vector.broadcast %cst_11 : f32 to vector<2x32xf32>
      %14 = arith.mulf %12, %13 : vector<2x32xf32>
      %15 = arith.truncf %14 : vector<2x32xf32> to vector<2x32xbf16>
      %c0_12 = arith.constant 0 : index
      %c0_13 = arith.constant 0 : index
      %16 = vector.load %arg3[%c0_12, %c0_13] : memref<32x32xbf16, #tpu.memory_space<vmem>>, vector<32x32xbf16>
      %cst_14 = arith.constant dense<0.000000e+00> : vector<2x32xf32>
      %17 = tpu.matmul %15, %16, %cst_14 {dimension_numbers = #tpu.dot_dimension_numbers<[1], [0], [0], [1], [0, 0, 1, 1], [], []>} : vector<2x32xbf16>, vector<32x32xbf16>, vector<2x32xf32> -> vector<2x32xf32>
      %c0_15 = arith.constant 0 : index
      %c0_16 = arith.constant 0 : index
      %18 = vector.load %arg4[%c0_15, %c0_16] : memref<1x32xf32, #tpu.memory_space<vmem>>, vector<1x32xf32>
      %19 = vector.broadcast %18 : vector<1x32xf32> to vector<2x32xf32>
      %20 = arith.addf %17, %19 : vector<2x32xf32>
      %cst_17 = arith.constant 5.000000e-01 : f32
      %21 = vector.broadcast %cst_17 : f32 to vector<2x32xf32>
      %22 = arith.mulf %21, %20 : vector<2x32xf32>
      %cst_18 = arith.constant 1.41421354 : f32
      %23 = vector.broadcast %cst_18 : f32 to vector<2x32xf32>
      %24 = arith.divf %20, %23 : vector<2x32xf32>
      %25 = math.erf %24 : vector<2x32xf32>
      %cst_19 = arith.constant 1.000000e+00 : f32
      %26 = vector.broadcast %cst_19 : f32 to vector<2x32xf32>
      %27 = arith.addf %26, %25 : vector<2x32xf32>
      %28 = arith.mulf %22, %27 : vector<2x32xf32>
      %29 = arith.truncf %28 : vector<2x32xf32> to vector<2x32xbf16>
      %c0_20 = arith.constant 0 : index
      %c0_21 = arith.constant 0 : index
      %30 = vector.load %arg5[%c0_20, %c0_21] : memref<32x128xbf16, #tpu.memory_space<vmem>>, vector<32x128xbf16>
      %cst_22 = arith.constant dense<0.000000e+00> : vector<2x128xf32>
      %31 = tpu.matmul %29, %30, %cst_22 {dimension_numbers = #tpu.dot_dimension_numbers<[1], [0], [0], [1], [0, 0, 1, 1], [], []>} : vector<2x32xbf16>, vector<32x128xbf16>, vector<2x128xf32> -> vector<2x128xf32>
      %c0_23 = arith.constant 0 : index
      %c0_24 = arith.constant 0 : index
      %32 = vector.load %arg6[%c0_23, %c0_24] : memref<1x128xf32, #tpu.memory_space<vmem>>, vector<1x128xf32>
      %33 = vector.broadcast %32 : vector<1x128xf32> to vector<2x128xf32>
      %34 = arith.addf %31, %33 : vector<2x128xf32>
      %c0_25 = arith.constant 0 : index
      %c0_26 = arith.constant 0 : index
      %35 = vector.load %arg7[%c0_25, %c0_26] : memref<2x128xf32, #tpu.memory_space<vmem>>, vector<2x128xf32>
      tpu.vector_store %arg7[%c0_25, %c0_26], %34 {strides = array<i32>} : memref<2x128xf32, #tpu.memory_space<vmem>>, vector<2x128xf32>,
    } else {
    }
    return
  }
  func.func @transform_0(%arg0: i32, %arg1: i32) -> (i32, i32, i32) {
    %c0_i32 = arith.constant 0 : i32
    %c0_i32_0 = arith.constant 0 : i32
    return %arg0, %arg1, %c0_i32 : i32, i32, i32
  }
  func.func @transform_1(%arg0: i32, %arg1: i32) -> (i32, i32) {
    %c0_i32 = arith.constant 0 : i32
    %c0_i32_0 = arith.constant 0 : i32
    %c0_i32_1 = arith.constant 0 : i32
    return %c0_i32, %c0_i32_0 : i32, i32
  }
  func.func @transform_2(%arg0: i32, %arg1: i32) -> (i32, i32) {
    %c0_i32 = arith.constant 0 : i32
    %c0_i32_0 = arith.constant 0 : i32
    %c0_i32_1 = arith.constant 0 : i32
    return %c0_i32, %c0_i32_0 : i32, i32
  }
  func.func @transform_3(%arg0: i32, %arg1: i32) -> (i32, i32) {
    %c0_i32 = arith.constant 0 : i32
    %c0_i32_0 = arith.constant 0 : i32
    %c0_i32_1 = arith.constant 0 : i32
    return %c0_i32, %c0_i32_0 : i32, i32
  }
  func.func @transform_4(%arg0: i32, %arg1: i32) -> (i32, i32) {
    %c0_i32 = arith.constant 0 : i32
    %c0_i32_0 = arith.constant 0 : i32
    %c0_i32_1 = arith.constant 0 : i32
    return %c0_i32, %c0_i32_0 : i32, i32
  }
  func.func @transform_5(%arg0: i32, %arg1: i32) -> (i32, i32) {
    %c0_i32 = arith.constant 0 : i32
    %c0_i32_0 = arith.constant 0 : i32
    return %arg0, %c0_i32 : i32, i32
  }
}

</mosaic_0001>

<llo_original>
// kernel: tpu_custom_call.1
$region0: #{tpu_custom_call.1}
  #allocation0 [shape = 'u32[]', space=smem, size = 0x4, offset = 0x4, fixed_abs, tag = 'smem constant byte address 0x4 - core index']
  #allocation1 [shape = 'u32[144,128]{1,0:T(1,128)}', space=vmem, size = 0x12000, scoped, tag = 'internal scratch']
  #allocation2 [shape = 'f32[2,32]{1,0:T(2,128)}', space=vmem, size = 0x400, scoped, tag = 'scratch operand']
  %s0 = inlined_call_operand.hbm [shape: bf16[2,8,32], index: 0, kind: input, shape index: {}]
  %s1 = inlined_call_operand.hbm [shape: bf16[32,32], index: 1, kind: input, shape index: {}]
  %s2 = inlined_call_operand.vmem [shape: f32[1,32], index: 2, kind: input, shape index: {}]
  %s3 = inlined_call_operand.hbm [shape: bf16[32,128], index: 3, kind: input, shape index: {}]
  %s4 = inlined_call_operand.vmem [shape: f32[1,128], index: 4, kind: input, shape index: {}]
  %s5 = inlined_call_operand.hbm [shape: f32[2,128], index: 5, kind: output, shape index: {}]
  %s6 = sld [smem:[#allocation0]]
  $region50: #{tpu_custom_call.1} parent=0
    _
  %s8 = ssub.s32 1, %s6
  %s9 = scalar_select 0, %s8, %s6
  $region1: #{tpu_custom_call.1} parent=0
    #allocation3 [shape = 'u8[4096]{0}', space=vmem, size = 0x1000, scoped, tag = 'input window, operand 0, single buffered']
    #allocation4 [shape = 's32[1]{0}', space=sflag, size = 0x4, scoped, tag = 'scoped memory for tpu_custom_call.1']
    #allocation5 [shape = 's32[1]{0}', space=sflag, size = 0x4, scoped, tag = 'scoped memory for tpu_custom_call.1']
    #allocation6 [shape = 'u8[8192]{0}', space=vmem, size = 0x2000, scoped, tag = 'input window, operand 1, single buffered']
    #allocation7 [shape = 's32[1]{0}', space=sflag, size = 0x4, scoped, tag = 'scoped memory for tpu_custom_call.1']
    #allocation8 [shape = 'u8[8192]{0}', space=vmem, size = 0x2000, scoped, tag = 'input window, operand 3, single buffered']
    #allocation9 [shape = 'u8[1024]{0}', space=vmem, size = 0x400, scoped, tag = 'output window, operand 0, single buffered']
    %10 = vsyncpa [#allocation4], 0
    %11 = vsyncpa [#allocation7], 0
    %12 = vsyncpa [#allocation5], 0
    // Predicated region
    $region2: #{tpu_custom_call.1} parent=1 // pred_check
      _
    $region3: #{tpu_custom_call.1} parent=1 // pred_check_branch
      %14 = sbr.rel (0) target = $region5
    $region4: #{tpu_custom_call.1} parent=1 // pred_region
      %s16 = ssub.s32 128, 128
      %17 = vsyncadd [#allocation4], %s16
      %s18 = sshll.u32 [#allocation3], 4
      %s19 = int_to_ptr.vmem [resolvable:$true] %s18
      %24 = dma.hbm_to_vmem [thread:$0]  %s0, 128, %s19, [#allocation4], 64, 64, 4
    $region5: #{tpu_custom_call.1} parent=1 // pred_fallthru
      _
    // Predicated region
    $region6: #{tpu_custom_call.1} parent=1 // pred_check
      _
    $region7: #{tpu_custom_call.1} parent=1 // pred_check_branch
      %26 = sbr.rel (0) target = $region9
    $region8: #{tpu_custom_call.1} parent=1 // pred_region
      %s28 = ssub.s32 256, 256
      %29 = vsyncadd [#allocation7], %s28
      %s30 = sshll.u32 [#allocation6], 4
      %s31 = int_to_ptr.vmem [resolvable:$true] %s30
      %36 = dma.hbm_to_vmem [thread:$0]  %s1, 256, %s31, [#allocation7], 64, 64, 4
    $region9: #{tpu_custom_call.1} parent=1 // pred_fallthru
      _
    // Predicated region
    $region10: #{tpu_custom_call.1} parent=1 // pred_check
      _
    $region11: #{tpu_custom_call.1} parent=1 // pred_check_branch
      %38 = sbr.rel (0) target = $region13
    $region12: #{tpu_custom_call.1} parent=1 // pred_region
      _
    $region13: #{tpu_custom_call.1} parent=1 // pred_fallthru
      _
    // Predicated region
    $region14: #{tpu_custom_call.1} parent=1 // pred_check
      _
    $region15: #{tpu_custom_call.1} parent=1 // pred_check_branch
      %40 = sbr.rel (0) target = $region17
    $region16: #{tpu_custom_call.1} parent=1 // pred_region
      %s42 = ssub.s32 256, 256
      %43 = vsyncadd [#allocation7], %s42
      %s44 = sshll.u32 [#allocation8], 4
      %s45 = int_to_ptr.vmem [resolvable:$true] %s44
      %50 = dma.hbm_to_vmem [thread:$0]  %s3, 256, %s45, [#allocation7], 64, 64, 4
    $region17: #{tpu_custom_call.1} parent=1 // pred_fallthru
      _
    // Predicated region
    $region18: #{tpu_custom_call.1} parent=1 // pred_check
      _
    $region19: #{tpu_custom_call.1} parent=1 // pred_check_branch
      %52 = sbr.rel (0) target = $region21
    $region20: #{tpu_custom_call.1} parent=1 // pred_region
      _
    $region21: #{tpu_custom_call.1} parent=1 // pred_fallthru
      _
    // Predicated region
    $region22: #{tpu_custom_call.1} parent=1 // pred_check
      _
    $region23: #{tpu_custom_call.1} parent=1 // pred_check_branch
      %54 = sbr.rel (0) target = $region25
    $region24: #{tpu_custom_call.1} parent=1 // pred_region
      %55 = dma.done [#allocation4], 128
    $region25: #{tpu_custom_call.1} parent=1 // pred_fallthru
      _
    // Predicated region
    $region26: #{tpu_custom_call.1} parent=1 // pred_check
      _
    $region27: #{tpu_custom_call.1} parent=1 // pred_check_branch
      %57 = sbr.rel (0) target = $region29
    $region28: #{tpu_custom_call.1} parent=1 // pred_region
      %58 = dma.done [#allocation7], 256
    $region29: #{tpu_custom_call.1} parent=1 // pred_fallthru
      _
    // Predicated region
    $region30: #{tpu_custom_call.1} parent=1 // pred_check
      _
    $region31: #{tpu_custom_call.1} parent=1 // pred_check_branch
      %60 = sbr.rel (0) target = $region33
    $region32: #{tpu_custom_call.1} parent=1 // pred_region
      %61 = dma.done [#allocation7], 256
    $region33: #{tpu_custom_call.1} parent=1 // pred_fallthru
      _
    %p63 = scmp.eq.s32.totalorder 0, 0
    // Predicated region
    $region34: #{tpu_custom_call.1} parent=1 // pred_check
      %p64 = pneg %p63
    $region35: #{tpu_custom_call.1} parent=1 // pred_check_branch
      %66 = sbr.rel (%p64) target = $region37
    $region36: #{tpu_custom_call.1} parent=1 // pred_region
      %vm67 = vcmask 254976
      %68 = vst.msk [vmem:[#allocation2] sm:$0x3] %vm67, 0.0
    $region37: #{tpu_custom_call.1} parent=1 // pred_fallthru
      _
    %v69 = vld [vmem:[#allocation2] sm:$0x3]
    %v70 = vld [vmem:[#allocation3] sm:$0xf]
    %v71 = vld [vmem:[#allocation3 + $0x4] sm:$0xf]
    %v72 = vunpack.c.l.bf16 %v70
    %v73 = vunpack.c.l.bf16 %v71
    %vm74 = vcmask 261120
    %v75 = vsel %vm74, %v72, 0.0
    %v76 = vrot.slane %v75, 4
    %v77 = vadd.f32 %v75, %v76
    %v78 = vrot.slane %v77, 2
    %v79 = vadd.f32 %v77, %v78
    %v80 = vrot.slane %v79, 1
    %v81 = vadd.f32 %v79, %v80
    %v82 = vsel %vm74, %v73, 0.0
    %v83 = vrot.slane %v82, 4
    %v84 = vadd.f32 %v82, %v83
    %v85 = vrot.slane %v84, 2
    %v86 = vadd.f32 %v84, %v85
    %v87 = vrot.slane %v86, 1
    %v88 = vadd.f32 %v86, %v87
    %vm91 = vcmask 1041409
    %v92 = vsel %vm91, %v88, %v81
    %v94 = vadd.f32 %v69, %v92
    %vm95 = vcmask 254976
    %96 = vst.msk [vmem:[#allocation2] sm:$0x3] %vm95, %v94
    // Predicated region
    $region38: #{tpu_custom_call.1} parent=1 // pred_check
      %p97 = pneg %p63
    $region39: #{tpu_custom_call.1} parent=1 // pred_check_branch
      %99 = sbr.rel (%p97) target = $region41
    $region40: #{tpu_custom_call.1} parent=1 // pred_region
      %v100 = vld [vmem:[#allocation2] sm:$0x3]
      %v101 = vmul.f32 %v100, 0.125
      %v102 = vpack.c.bf16 %v101, %v101
      %v103 = vld [vmem:[#allocation6] sm:$0xf]
      %v104 = vld [vmem:[#allocation6 + $0x4] sm:$0xf]
      %v105 = vld [vmem:[#allocation6 + $0x8] sm:$0xf]
      %v106 = vld [vmem:[#allocation6 + $0xc] sm:$0xf]
      %v107 = vld [vmem:[%s2] sm:$0x1]
      %v109 = vlaneseq
      %v110 = vshrl.u32 %v109, 7
      %v111 = vsub.s32 0, %v110
      %v112 = vrot.slane %v107, %v111
      %v118 = vunpack.c.l.b16 %v103
      %v119 = vunpack.c.l.b16 %v104
      %v120 = vunpack.c.l.b16 %v105
      %v121 = vunpack.c.l.b16 %v106
      %v122 = vpack.c.b16 %v119, %v118
      %v123 = vpack.c.b16 %v121, %v120
      %v127 = vsel %vm74, %v102, 0
      %129 = vmatprep.subr.bf16.mxu0 0
      %130 = vmatpush1.bf16.msra.mxu0 0
      %131 = vmatprep.subr.bf16.mxu0 0
      %132 = vmatpush1.bf16.msra.mxu0 0
      %133 = vmatprep.subr.bf16.mxu0 0
      %134 = vmatpush1.bf16.msra.mxu0 0
      %135 = vmatprep.subr.bf16.mxu0 0
      %136 = vmatpush1.bf16.msra.mxu0 0
      %137 = vmatprep.subr.bf16.mxu0 0
      %138 = vmatpush1.bf16.msra.mxu0 0
      %139 = vmatprep.subr.bf16.mxu0 0
      %140 = vmatpush1.bf16.msra.mxu0 0
      %141 = vmatprep.subr.bf16.mxu0 0
      %142 = vmatpush1.bf16.msra.mxu0 %v123
      %143 = vmatprep.subr.bf16.mxu0 0
      %144 = vmatpush1.bf16.msra.mxu0 %v122
      %145 = vmatprep.subr.bf16.mxu0 0
      %146 = vmatpush2.bf16.msra.mxu0 0
      %147 = vmatprep.subr.bf16.mxu0 0
      %148 = vmatpush2.bf16.msra.mxu0 0
      %149 = vmatprep.subr.bf16.mxu0 0
      %150 = vmatpush2.bf16.msra.mxu0 0
      %151 = vmatprep.subr.bf16.mxu0 0
      %152 = vmatpush2.bf16.msra.mxu0 0
      %153 = vmatprep.subr.bf16.mxu0 0
      %154 = vmatpush2.bf16.msra.mxu0 0
      %155 = vmatprep.subr.bf16.mxu0 0
      %156 = vmatpush2.bf16.msra.mxu0 0
      %157 = vmatprep.subr.bf16.mxu0 0
      %158 = vmatpush2.bf16.msra.mxu0 0
      %159 = vmatprep.subr.bf16.mxu0 0
      %160 = vmatpush2.bf16.msra.mxu0 0
      %161 = vmatprep.mubr.bf16.mxu0 0
      %162 = vmatmul.mubr.bf16.gmra.mxu0 %v127
      %v163 = vpop.f32.mrf.mxu0
      %v164 = vadd.f32 %v112, %v163
      %v165 = vpop.f32.mrf.mxu0
      %v166 = vpop.f32.mrf.mxu0
      %v167 = vpop.f32.mrf.mxu0
      %168 = vdwg.mxu0
      %v169 = vmul.f32 %v164, 0.5
      %v170 = vrcp.pop 1.4142135
      %v171 = vmul.f32 %v164, %v170
      %v172 = verf.f32.pop %v171
      %v173 = vadd.f32 %v172, 1.0
      %v174 = vmul.f32 %v169, %v173
      %v175 = vpack.c.bf16 %v174, %v174
      %v176 = vld [vmem:[#allocation8] sm:$0xf]
      %v177 = vld [vmem:[#allocation8 + $0x4] sm:$0xf]
      %v178 = vld [vmem:[#allocation8 + $0x8] sm:$0xf]
      %v179 = vld [vmem:[#allocation8 + $0xc] sm:$0xf]
      %v180 = vld [vmem:[%s4] sm:$0x1]
      %v182 = vlaneseq
      %v183 = vshrl.u32 %v182, 7
      %v184 = vsub.s32 0, %v183
      %v185 = vrot.slane %v180, %v184
      %v191 = vunpack.c.l.b16 %v176
      %v192 = vunpack.c.l.b16 %v177
      %v193 = vunpack.c.l.b16 %v178
      %v194 = vunpack.c.l.b16 %v179
      %v195 = vpack.c.b16 %v192, %v191
      %v196 = vpack.c.b16 %v194, %v193
      %v200 = vsel %vm74, %v175, 0
      %202 = vmatprep.subr.bf16.mxu0 0
      %203 = vmatpush1.bf16.msra.mxu0 0
      %204 = vmatprep.subr.bf16.mxu0 0
      %205 = vmatpush1.bf16.msra.mxu0 0
      %206 = vmatprep.subr.bf16.mxu0 0
      %207 = vmatpush1.bf16.msra.mxu0 0
      %208 = vmatprep.subr.bf16.mxu0 0
      %209 = vmatpush1.bf16.msra.mxu0 0
      %210 = vmatprep.subr.bf16.mxu0 0
      %211 = vmatpush1.bf16.msra.mxu0 0
      %212 = vmatprep.subr.bf16.mxu0 0
      %213 = vmatpush1.bf16.msra.mxu0 0
      %214 = vmatprep.subr.bf16.mxu0 0
      %215 = vmatpush1.bf16.msra.mxu0 %v196
      %216 = vmatprep.subr.bf16.mxu0 0
      %217 = vmatpush1.bf16.msra.mxu0 %v195
      %218 = vmatprep.subr.bf16.mxu0 0
      %219 = vmatpush2.bf16.msra.mxu0 0
      %220 = vmatprep.subr.bf16.mxu0 0
      %221 = vmatpush2.bf16.msra.mxu0 0
      %222 = vmatprep.subr.bf16.mxu0 0
      %223 = vmatpush2.bf16.msra.mxu0 0
      %224 = vmatprep.subr.bf16.mxu0 0
      %225 = vmatpush2.bf16.msra.mxu0 0
      %226 = vmatprep.subr.bf16.mxu0 0
      %227 = vmatpush2.bf16.msra.mxu0 0
      %228 = vmatprep.subr.bf16.mxu0 0
      %229 = vmatpush2.bf16.msra.mxu0 0
      %230 = vmatprep.subr.bf16.mxu0 0
      %231 = vmatpush2.bf16.msra.mxu0 0
      %232 = vmatprep.subr.bf16.mxu0 0
      %233 = vmatpush2.bf16.msra.mxu0 0
      %234 = vmatprep.mubr.bf16.mxu0 0
      %235 = vmatmul.mubr.bf16.gmra.mxu0 %v200
      %v236 = vpop.f32.mrf.mxu0
      %v237 = vadd.f32 %v185, %v236
      %v238 = vpop.f32.mrf.mxu0
      %v239 = vpop.f32.mrf.mxu0
      %v240 = vpop.f32.mrf.mxu0
      %241 = vdwg.mxu0
      %242 = vst [vmem:[#allocation9] sm:$0x3] %v237
    $region41: #{tpu_custom_call.1} parent=1 // pred_fallthru
      _
    // Predicated region
    $region42: #{tpu_custom_call.1} parent=1 // pred_check
      _
    $region43: #{tpu_custom_call.1} parent=1 // pred_check_branch
      %244 = sbr.rel (0) target = $region45
    $region44: #{tpu_custom_call.1} parent=1 // pred_region
      %s246 = ssub.s32 32, 32
      %247 = vsyncadd [#allocation5], %s246
      %s249 = sshll.u32 [#allocation9], 4
      %s250 = int_to_ptr.vmem [resolvable:$true] %s249
      %252 = dma.vmem_to_hbm [thread:$0]  %s250, 32, %s5, [#allocation5]
    $region45: #{tpu_custom_call.1} parent=1 // pred_fallthru
      _
    // Predicated region
    $region46: #{tpu_custom_call.1} parent=1 // pred_check
      _
    $region47: #{tpu_custom_call.1} parent=1 // pred_check_branch
      %254 = sbr.rel (0) target = $region49
    $region48: #{tpu_custom_call.1} parent=1 // pred_region
      %255 = dma.done [#allocation5], 32
    $region49: #{tpu_custom_call.1} parent=1 // pred_fallthru
      _
    %256 = vsyncpa [#allocation4], 1
    %257 = vsyncpa [#allocation7], 1
    %258 = vsyncpa [#allocation5], 1

</llo_original>
